<compile_context>
chip_gen: v7x
topology: tpu7x:2x2x1
jax: 0.10.0
libtpu: 0.0.40
codegen_flags: <defaults>
</compile_context>

<pallas_src>
import functools

import jax
import jax.numpy as jnp
from jax.experimental import pallas as pl
from jax.experimental.pallas import tpu as pltpu


# --------------------------- Backbone kernel ------------------------------- #
# Grid = (image b, pixel tile s); both views handled per grid step.
#   xf_ref / xl_ref : [C, TILE_S] f32   pixel tile (HW on lanes), cast to bf16
#                                        in-kernel after the DMA
#   w_ref           : [2, F, C+1] bf16  per-view 1x1-conv weight, bias folded
#                                        in as the last column
#   out_ref (out)   : [F, 2]      f32   per-image pooled features; VMEM-resident
#                                        accumulator across s (col0=frontal,
#                                        col1=lateral)
#   xaug_ref        : [C+1, TILE_S] f32 scratch: pixel tile + ones row so the
#                                        bias add happens inside the MXU matmul
def _backbone_kernel(xf_ref, xl_ref, w_ref, out_ref, xaug_ref,
                     *, channels, inv_hw):
    s = pl.program_id(1)

    @pl.when(s == 0)
    def _():
        out_ref[...] = jnp.zeros_like(out_ref)

    tile_s = xf_ref.shape[-1]
    # Ones row: the bias column of w contributes b*1 inside the MXU contraction.
    xaug_ref[channels:channels + 1, :] = jnp.ones((1, tile_s), jnp.float32)
    # Pooling vector pre-scaled by 1/HW: the spatial reduction runs on the
    # (otherwise ~idle) MXU and no finalize division is needed.
    pool_vec = jnp.full((tile_s, 1), inv_hw, dtype=jnp.float32)

    def one_view(x_ref, w2d, col):
        xaug_ref[0:channels, :] = x_ref[...]                      # f32 -> scratch
        xa = xaug_ref[...].astype(jnp.bfloat16)                   # [C+1, S] bf16
        h = jnp.dot(w2d, xa, preferred_element_type=jnp.float32)  # conv+bias, MXU
        h = jnp.maximum(h, 0.0)                                   # ReLU (VPU)
        out_ref[:, col:col + 1] += jnp.dot(                       # pool, MXU
            h, pool_vec, preferred_element_type=jnp.float32)

    one_view(xf_ref, w_ref[0], 0)
    one_view(xl_ref, w_ref[1], 1)


# ----------------------------- Head kernel --------------------------------- #
# Single invocation (tiny, B rows).  pooled arrives (feature, view)-interleaved
# so merge_linear uses the pre-permuted weight; feature_linear + classfy_linear
# share one fused [2F, E+NC] matmul and the result is sliced.
def _head_kernel(pooled_ref, wm_ref, bm_ref, wh_ref, bh_ref, gamma_ref,
                 beta_ref, logits_ref, feat_ref, *, embed_size):
    f32 = jnp.float32
    merged = (jnp.dot(pooled_ref[...], wm_ref[...], preferred_element_type=f32)
              + bm_ref[...])                                      # [B, 2F]
    hz = jnp.dot(merged, wh_ref[...], preferred_element_type=f32) + bh_ref[...]
    feat_pre = hz[:, :embed_size]                                 # [B, E]
    logits_ref[...] = hz[:, embed_size:]                          # [B, NC]

    mu = jnp.mean(feat_pre, axis=-1, keepdims=True)
    var = jnp.mean((feat_pre - mu) ** 2, axis=-1, keepdims=True)
    normed = (feat_pre - mu) * jax.lax.rsqrt(var + 1e-6)
    feat_ref[...] = normed * gamma_ref[...] + beta_ref[...]


# ------------------------------- Wrapper ------------------------------------ #
def _choose_pixel_tile(hw, target):
    """Largest multiple of 128 that divides hw and is <= target (fallback: hw).

    Fallback (hw not divisible by 128) uses a single full-HW tile; correct, but
    for very large non-128-divisible HW the f32 activation may be VMEM-heavy.
    """
    if hw % 128 != 0 or hw <= target:
        return hw
    best = 128
    t = 128
    while t <= min(hw, target):
        if hw % t == 0:
            best = t
        t += 128
    return best


@functools.partial(jax.jit, static_argnames=("feat_dim", "embed_size",
                                             "num_classes", "pixel_tile",
                                             "vmem_budget_mib"))
def encoder_cnn_forward(images_frontal, images_lateral, params, *,
                        feat_dim, embed_size, num_classes,
                        pixel_tile=None, vmem_budget_mib=40):
    """images_*: NCHW float32 [B, C, H, W].  Returns (logits, features)."""
    B, C, H, W = images_frontal.shape
    HW = H * W

    if pixel_tile is None:
        # Size the pixel tile from the real VMEM consumer: the f32 [F, tile_s]
        # activation (x2 for the two views overlapping under the pipeline),
        # double-buffered f32 input blocks and the augmented-x scratch.
        # 40 MiB default stays safe on v7x's 64 MiB/TC; v5e/v6e have headroom.
        per_col = 8 * feat_dim + 16 * C + 4 * (C + 1)
        pixel_tile = max(128, (vmem_budget_mib << 20) // per_col)
    tile_s = _choose_pixel_tile(HW, pixel_tile)
    n_tiles = HW // tile_s

    # NCHW already has the spatial axis last: reshape is metadata-only, so the
    # images stream straight from HBM as f32 (no stack / bf16-cast HBM pass).
    xf = images_frontal.reshape(B, C, HW)
    xl = images_lateral.reshape(B, C, HW)
    w_aug = params["wc_aug_bf16"]                                 # [2, F, C+1]

    vmem_need = (2 * feat_dim * tile_s * 4      # two per-view f32 activations
                 + 4 * C * tile_s * 4           # 2 views x double-buffered input
                 + (C + 1) * tile_s * 4         # augmented-x scratch
                 + 2 * feat_dim * (C + 1) * 2   # bf16 conv weights
                 + 2 * feat_dim * 128 * 4)      # lane-padded pooled out blocks
    # Cap at 56 MiB so the same limit is safe on v7x (64 MiB/TC); v5e/v6e could
    # be raised further for even bigger tiles.
    vmem_limit = int(min(56 << 20, max(32 << 20, int(vmem_need * 1.3) + (2 << 20))))

    # ---- backbone: per-view 1x1 conv (+bias) + ReLU + global average pool --
    pooled_fv = pl.pallas_call(
        functools.partial(_backbone_kernel, channels=C, inv_hw=1.0 / HW),
        out_shape=jax.ShapeDtypeStruct((B, feat_dim, 2), jnp.float32),
        grid_spec=pltpu.PrefetchScalarGridSpec(
            num_scalar_prefetch=0,
            grid=(B, n_tiles),
            in_specs=[
                pl.BlockSpec((None, C, tile_s), lambda b, s: (b, 0, s)),
                pl.BlockSpec((None, C, tile_s), lambda b, s: (b, 0, s)),
                pl.BlockSpec((2, feat_dim, C + 1), lambda b, s: (0, 0, 0)),
            ],
            out_specs=pl.BlockSpec((None, feat_dim, 2), lambda b, s: (b, 0, 0)),
            scratch_shapes=[pltpu.VMEM((C + 1, tile_s), jnp.float32)],
        ),
        compiler_params=pltpu.CompilerParams(
            # On v7x the leading (batch) axis can shard across the 2 TCs.
            dimension_semantics=("parallel", "arbitrary"),
            vmem_limit_bytes=vmem_limit),
    )(xf, xl, w_aug)

    # [B, F, 2] -> [B, 2F] is contiguous (metadata-only); the (feature, view)
    # interleaving is absorbed by the pre-permuted merge weight.
    pooled = pooled_fv.reshape(B, 2 * feat_dim)

    # ---- heads: merge_linear, feature_linear + LayerNorm, classfy_linear ---
    vmem = pltpu.MemorySpace.VMEM
    logits, features = pl.pallas_call(
        functools.partial(_head_kernel, embed_size=embed_size),
        out_shape=(
            jax.ShapeDtypeStruct((B, num_classes), jnp.float32),
            jax.ShapeDtypeStruct((B, embed_size), jnp.float32),
        ),
        in_specs=[pl.BlockSpec(memory_space=vmem)] * 7,
        out_specs=(pl.BlockSpec(memory_space=vmem),
                   pl.BlockSpec(memory_space=vmem)),
    )(pooled, params["w_merge_perm"], params["b_merge"], params["w_head"],
      params["b_head"], params["ln_gamma"], params["ln_beta"])
    return logits, features


def init_params(key, in_channels, feat_dim, embed_size, num_classes):
    """Deterministic synthetic parameters (no checkpoint load)."""
    ks = jax.random.split(key, 8)
    s = 0.05
    two_f = 2 * feat_dim

    def rnd(k, shape):
        return jax.random.normal(k, shape, jnp.float32) * s

    wc = rnd(ks[0], (2, feat_dim, in_channels))        # per-view 1x1 conv weight
    bc = rnd(ks[1], (2, feat_dim, 1))                  # per-view conv bias
    w_merge = rnd(ks[2], (two_f, two_f))               # merge_linear
    b_merge = rnd(ks[3], (1, two_f))
    w_feat = rnd(ks[4], (two_f, embed_size))           # feature_linear
    b_feat = rnd(ks[5], (1, embed_size))
    w_cls = rnd(ks[6], (two_f, num_classes))           # classfy_linear
    b_cls = rnd(ks[7], (1, num_classes))

    # Hoisted, kernel-ready forms (built once, NOT per forward call):
    #  * conv weight with the bias folded in as the last column, bf16 for MXU
    #  * merge weight rows permuted to the kernel's (feature, view)-interleaved
    #    pooled layout: perm[f*2 + v, :] = w_merge[v*F + f, :]
    #  * feature|classify weights concatenated into a single head matmul
    wc_aug_bf16 = jnp.concatenate([wc, bc], axis=-1).astype(jnp.bfloat16)
    w_merge_perm = jnp.transpose(
        w_merge.reshape(2, feat_dim, two_f), (1, 0, 2)).reshape(two_f, two_f)
    w_head = jnp.concatenate([w_feat, w_cls], axis=1)
    b_head = jnp.concatenate([b_feat, b_cls], axis=1)

    return {
        "wc_views": wc, "bc_views": bc, "wc_aug_bf16": wc_aug_bf16,
        "w_merge": w_merge, "b_merge": b_merge, "w_merge_perm": w_merge_perm,
        "w_feat": w_feat, "b_feat": b_feat,
        "w_cls": w_cls, "b_cls": b_cls,
        "w_head": w_head, "b_head": b_head,
        "ln_gamma": jnp.ones((1, embed_size), jnp.float32),
        "ln_beta": jnp.zeros((1, embed_size), jnp.float32),
    }


# ----------------------------- Reference (JAX) ------------------------------ #
def _reference(images_frontal, images_lateral, params, eps=1e-6):
    B, C, H, W = images_frontal.shape
    HW = H * W
    # Mirror the kernel's bf16 storage of pixels, conv weight and (folded) bias.
    wc = params["wc_views"].astype(jnp.bfloat16).astype(jnp.float32)
    bc = params["bc_views"].astype(jnp.bfloat16).astype(jnp.float32)

    def backbone(x, w, b):
        xb = x.reshape(B, C, HW).astype(jnp.bfloat16).astype(jnp.float32)
        h = jnp.einsum("fc,bcs->bfs", w, xb) + b[None, :, :]      # [B, F, HW]
        h = jnp.maximum(h, 0.0)
        return jnp.mean(h, axis=-1)                               # [B, F]

    pf = backbone(images_frontal, wc[0], bc[0])
    plat = backbone(images_lateral, wc[1], bc[1])
    cat = jnp.concatenate([pf, plat], axis=-1)                    # [B, 2F]
    merged = cat @ params["w_merge"] + params["b_merge"][0]
    fp = merged @ params["w_feat"] + params["b_feat"][0]
    mu = jnp.mean(fp, -1, keepdims=True)
    var = jnp.mean((fp - mu) ** 2, -1, keepdims=True)
    feat = (fp - mu) / jnp.sqrt(var + eps) * params["ln_gamma"][0] \
        + params["ln_beta"][0]
    logits = merged @ params["w_cls"] + params["b_cls"][0]
    return logits, feat


# --------------------------------- Main ------------------------------------- #
if __name__ == "__main__":
    B, C, H, W = 2, 4, 16, 16          # small NCHW images
    FEAT_DIM = 32                      # stand-in for resnet18 fc.in_features (512)
    EMBED_SIZE = 32
    NUM_CLASSES = 16

    key = jax.random.PRNGKey(0)
    k_imgf, k_imgl, k_param = jax.random.split(key, 3)
    images_frontal = jax.random.normal(k_imgf, (B, C, H, W), jnp.float32)
    images_lateral = jax.random.normal(k_imgl, (B, C, H, W), jnp.float32)
    params = init_params(k_param, C, FEAT_DIM, EMBED_SIZE, NUM_CLASSES)

    # pixel_tile=128 -> HW=256 gives 2 pixel-tile grid steps, exercising the
    # output-resident accumulator path.
    logits, features = encoder_cnn_forward(
        images_frontal, images_lateral, params,
        feat_dim=FEAT_DIM, embed_size=EMBED_SIZE, num_classes=NUM_CLASSES,
        pixel_tile=128)
    jax.block_until_ready((logits, features))

    ref_logits, ref_feat = _reference(images_frontal, images_lateral, params)
    assert logits.shape == (B, NUM_CLASSES) and features.shape == (B, EMBED_SIZE)
    err_logits = float(jnp.max(jnp.abs(logits - ref_logits)))
    err_feat = float(jnp.max(jnp.abs(features - ref_feat)))
    assert err_logits < 2e-4, f"logits max abs err {err_logits}"
    assert err_feat < 2e-4, f"features max abs err {err_feat}"

    print("KERNEL_OK")
</pallas_src>

<mosaic_0001>
module attributes {stable_mosaic.version = 11 : i64} {
  func.func @_backbone_kernel(%arg0: i32, %arg1: i32, %arg2: memref<1x4x128xf32, #tpu.memory_space<vmem>>, %arg3: memref<1x4x128xf32, #tpu.memory_space<vmem>>, %arg4: memref<2x32x5xbf16, #tpu.memory_space<vmem>>, %arg5: memref<1x32x2xf32, #tpu.memory_space<vmem>>, %arg6: memref<5x128xf32, #tpu.memory_space<vmem>>) attributes {dimension_semantics = [#tpu.dimension_semantics<parallel>, #tpu.dimension_semantics<arbitrary>], iteration_bounds = array<i64: 2, 2>, scalar_prefetch = 0 : i64, scratch_operands = 1 : i64, tpu.core_type = #tpu.core_type<tc>, window_params = [{transform_indices = @transform_0, window_bounds = array<i64: 1, 4, 128>}, {transform_indices = @transform_1, window_bounds = array<i64: 1, 4, 128>}, {pipeline_mode = #tpu.pipeline_mode<synchronous>, transform_indices = @transform_2, window_bounds = array<i64: 2, 32, 5>}, {transform_indices = @transform_3, window_bounds = array<i64: 1, 32, 2>}]} {
    %c0_i32 = arith.constant 0 : i32
    %0 = arith.cmpi eq, %arg1, %c0_i32 : i32
    %1 = arith.extui %0 : i1 to i32
    %c0_i32_0 = arith.constant 0 : i32
    %2 = arith.cmpi ne, %1, %c0_i32_0 : i32
    scf.if %2 {
      %cst_39 = arith.constant 0.000000e+00 : f32
      %40 = vector.broadcast %cst_39 : f32 to vector<32x2xf32>
      %c0_40 = arith.constant 0 : index
      %c0_41 = arith.constant 0 : index
      %c0_42 = arith.constant 0 : index
      %41 = vector.load %arg5[%c0_40, %c0_41, %c0_42] : memref<1x32x2xf32, #tpu.memory_space<vmem>>, vector<1x32x2xf32>
      %42 = vector.shape_cast %41 : vector<1x32x2xf32> to vector<32x2xf32>
      %43 = vector.shape_cast %40 : vector<32x2xf32> to vector<1x32x2xf32>
      tpu.vector_store %arg5[%c0_40, %c0_41, %c0_42], %43 {strides = array<i32>} : memref<1x32x2xf32, #tpu.memory_space<vmem>>, vector<1x32x2xf32>,
    } else {
    }
    %cst = arith.constant 1.000000e+00 : f32
    %3 = vector.broadcast %cst : f32 to vector<1x128xf32>
    %c4 = arith.constant 4 : index
    %c0 = arith.constant 0 : index
    %4 = vector.load %arg6[%c4, %c0] : memref<5x128xf32, #tpu.memory_space<vmem>>, vector<1x128xf32>
    tpu.vector_store %arg6[%c4, %c0], %3 {strides = array<i32>} : memref<5x128xf32, #tpu.memory_space<vmem>>, vector<1x128xf32>,
    %cst_1 = arith.constant 3.906250e-03 : f32
    %5 = vector.broadcast %cst_1 : f32 to vector<128x1xf32>
    %c0_2 = arith.constant 0 : index
    %c0_3 = arith.constant 0 : index
    %c0_4 = arith.constant 0 : index
    %6 = vector.load %arg4[%c0_2, %c0_3, %c0_4] : memref<2x32x5xbf16, #tpu.memory_space<vmem>>, vector<1x32x5xbf16>
    %7 = vector.shape_cast %6 : vector<1x32x5xbf16> to vector<32x5xbf16>
    %c0_5 = arith.constant 0 : index
    %c0_6 = arith.constant 0 : index
    %c0_7 = arith.constant 0 : index
    %8 = vector.load %arg2[%c0_5, %c0_6, %c0_7] : memref<1x4x128xf32, #tpu.memory_space<vmem>>, vector<1x4x128xf32>
    %9 = vector.shape_cast %8 : vector<1x4x128xf32> to vector<4x128xf32>
    %c0_8 = arith.constant 0 : index
    %c0_9 = arith.constant 0 : index
    %10 = vector.load %arg6[%c0_8, %c0_9] : memref<5x128xf32, #tpu.memory_space<vmem>>, vector<4x128xf32>
    tpu.vector_store %arg6[%c0_8, %c0_9], %9 {strides = array<i32>} : memref<5x128xf32, #tpu.memory_space<vmem>>, vector<4x128xf32>,
    %c0_10 = arith.constant 0 : index
    %c0_11 = arith.constant 0 : index
    %11 = vector.load %arg6[%c0_10, %c0_11] : memref<5x128xf32, #tpu.memory_space<vmem>>, vector<5x128xf32>
    %12 = arith.truncf %11 : vector<5x128xf32> to vector<5x128xbf16>
    %cst_12 = arith.constant dense<0.000000e+00> : vector<32x128xf32>
    %13 = tpu.matmul %7, %12, %cst_12 {dimension_numbers = #tpu.dot_dimension_numbers<[1], [0], [0], [1], [0, 0, 1, 1], [], []>} : vector<32x5xbf16>, vector<5x128xbf16>, vector<32x128xf32> -> vector<32x128xf32>
    %cst_13 = arith.constant 0.000000e+00 : f32
    %14 = vector.broadcast %cst_13 : f32 to vector<32x128xf32>
    %15 = arith.maximumf %13, %14 : vector<32x128xf32>
    %c0_14 = arith.constant 0 : index
    %c0_15 = arith.constant 0 : index
    %c0_16 = arith.constant 0 : index
    %16 = vector.load %arg5[%c0_14, %c0_15, %c0_16] : memref<1x32x2xf32, #tpu.memory_space<vmem>>, vector<1x32x1xf32>
    %17 = vector.shape_cast %16 : vector<1x32x1xf32> to vector<32x1xf32>
    %cst_17 = arith.constant dense<0.000000e+00> : vector<32x1xf32>
    %18 = tpu.matmul %15, %5, %cst_17 {dimension_numbers = #tpu.dot_dimension_numbers<[1], [0], [0], [1], [0, 0, 1, 1], [], []>} : vector<32x128xf32>, vector<128x1xf32>, vector<32x1xf32> -> vector<32x1xf32>
    %19 = arith.addf %17, %18 : vector<32x1xf32>
    %c0_18 = arith.constant 0 : index
    %c0_19 = arith.constant 0 : index
    %c0_20 = arith.constant 0 : index
    %20 = vector.load %arg5[%c0_18, %c0_19, %c0_20] : memref<1x32x2xf32, #tpu.memory_space<vmem>>, vector<1x32x1xf32>
    %21 = vector.shape_cast %20 : vector<1x32x1xf32> to vector<32x1xf32>
    %22 = vector.shape_cast %19 : vector<32x1xf32> to vector<1x32x1xf32>
    tpu.vector_store %arg5[%c0_18, %c0_19, %c0_20], %22 {strides = array<i32>} : memref<1x32x2xf32, #tpu.memory_space<vmem>>, vector<1x32x1xf32>,
    %c1 = arith.constant 1 : index
    %c0_21 = arith.constant 0 : index
    %c0_22 = arith.constant 0 : index
    %23 = vector.load %arg4[%c1, %c0_21, %c0_22] : memref<2x32x5xbf16, #tpu.memory_space<vmem>>, vector<1x32x5xbf16>
    %24 = vector.shape_cast %23 : vector<1x32x5xbf16> to vector<32x5xbf16>
    %c0_23 = arith.constant 0 : index
    %c0_24 = arith.constant 0 : index
    %c0_25 = arith.constant 0 : index
    %25 = vector.load %arg3[%c0_23, %c0_24, %c0_25] : memref<1x4x128xf32, #tpu.memory_space<vmem>>, vector<1x4x128xf32>
    %26 = vector.shape_cast %25 : vector<1x4x128xf32> to vector<4x128xf32>
    %c0_26 = arith.constant 0 : index
    %c0_27 = arith.constant 0 : index
    %27 = vector.load %arg6[%c0_26, %c0_27] : memref<5x128xf32, #tpu.memory_space<vmem>>, vector<4x128xf32>
    tpu.vector_store %arg6[%c0_26, %c0_27], %26 {strides = array<i32>} : memref<5x128xf32, #tpu.memory_space<vmem>>, vector<4x128xf32>,
    %c0_28 = arith.constant 0 : index
    %c0_29 = arith.constant 0 : index
    %28 = vector.load %arg6[%c0_28, %c0_29] : memref<5x128xf32, #tpu.memory_space<vmem>>, vector<5x128xf32>
    %29 = arith.truncf %28 : vector<5x128xf32> to vector<5x128xbf16>
    %cst_30 = arith.constant dense<0.000000e+00> : vector<32x128xf32>
    %30 = tpu.matmul %24, %29, %cst_30 {dimension_numbers = #tpu.dot_dimension_numbers<[1], [0], [0], [1], [0, 0, 1, 1], [], []>} : vector<32x5xbf16>, vector<5x128xbf16>, vector<32x128xf32> -> vector<32x128xf32>
    %cst_31 = arith.constant 0.000000e+00 : f32
    %31 = vector.broadcast %cst_31 : f32 to vector<32x128xf32>
    %32 = arith.maximumf %30, %31 : vector<32x128xf32>
    %c0_32 = arith.constant 0 : index
    %c0_33 = arith.constant 0 : index
    %c1_34 = arith.constant 1 : index
    %33 = vector.load %arg5[%c0_32, %c0_33, %c1_34] : memref<1x32x2xf32, #tpu.memory_space<vmem>>, vector<1x32x1xf32>
    %34 = vector.shape_cast %33 : vector<1x32x1xf32> to vector<32x1xf32>
    %cst_35 = arith.constant dense<0.000000e+00> : vector<32x1xf32>
    %35 = tpu.matmul %32, %5, %cst_35 {dimension_numbers = #tpu.dot_dimension_numbers<[1], [0], [0], [1], [0, 0, 1, 1], [], []>} : vector<32x128xf32>, vector<128x1xf32>, vector<32x1xf32> -> vector<32x1xf32>
    %36 = arith.addf %34, %35 : vector<32x1xf32>
    %c0_36 = arith.constant 0 : index
    %c0_37 = arith.constant 0 : index
    %c1_38 = arith.constant 1 : index
    %37 = vector.load %arg5[%c0_36, %c0_37, %c1_38] : memref<1x32x2xf32, #tpu.memory_space<vmem>>, vector<1x32x1xf32>
    %38 = vector.shape_cast %37 : vector<1x32x1xf32> to vector<32x1xf32>
    %39 = vector.shape_cast %36 : vector<32x1xf32> to vector<1x32x1xf32>
    tpu.vector_store %arg5[%c0_36, %c0_37, %c1_38], %39 {strides = array<i32>} : memref<1x32x2xf32, #tpu.memory_space<vmem>>, vector<1x32x1xf32>,
    return
  }
  func.func @transform_0(%arg0: i32, %arg1: i32) -> (i32, i32, i32) {
    %c0_i32 = arith.constant 0 : i32
    %c0_i32_0 = arith.constant 0 : i32
    return %arg0, %c0_i32, %arg1 : i32, i32, i32
  }
  func.func @transform_1(%arg0: i32, %arg1: i32) -> (i32, i32, i32) {
    %c0_i32 = arith.constant 0 : i32
    %c0_i32_0 = arith.constant 0 : i32
    return %arg0, %c0_i32, %arg1 : i32, i32, i32
  }
  func.func @transform_2(%arg0: i32, %arg1: i32) -> (i32, i32, i32) {
    %c0_i32 = arith.constant 0 : i32
    %c0_i32_0 = arith.constant 0 : i32
    %c0_i32_1 = arith.constant 0 : i32
    %c0_i32_2 = arith.constant 0 : i32
    return %c0_i32, %c0_i32_0, %c0_i32_1 : i32, i32, i32
  }
  func.func @transform_3(%arg0: i32, %arg1: i32) -> (i32, i32, i32) {
    %c0_i32 = arith.constant 0 : i32
    %c0_i32_0 = arith.constant 0 : i32
    %c0_i32_1 = arith.constant 0 : i32
    return %arg0, %c0_i32, %c0_i32_0 : i32, i32, i32
  }
}

module attributes {stable_mosaic.version = 11 : i64} {
  func.func @_head_kernel(%arg0: memref<2x64xf32, #tpu.memory_space<vmem>>, %arg1: memref<64x64xf32, #tpu.memory_space<vmem>>, %arg2: memref<1x64xf32, #tpu.memory_space<vmem>>, %arg3: memref<64x48xf32, #tpu.memory_space<vmem>>, %arg4: memref<1x48xf32, #tpu.memory_space<vmem>>, %arg5: memref<1x32xf32, #tpu.memory_space<vmem>>, %arg6: memref<1x32xf32, #tpu.memory_space<vmem>>, %arg7: memref<2x16xf32, #tpu.memory_space<vmem>>, %arg8: memref<2x32xf32, #tpu.memory_space<vmem>>) attributes {dimension_semantics = [], scalar_prefetch = 0 : i64, scratch_operands = 0 : i64, tpu.core_type = #tpu.core_type<tc>} {
    %c0 = arith.constant 0 : index
    %c0_0 = arith.constant 0 : index
    %0 = vector.load %arg0[%c0, %c0_0] : memref<2x64xf32, #tpu.memory_space<vmem>>, vector<2x64xf32>
    %c0_1 = arith.constant 0 : index
    %c0_2 = arith.constant 0 : index
    %1 = vector.load %arg1[%c0_1, %c0_2] : memref<64x64xf32, #tpu.memory_space<vmem>>, vector<64x64xf32>
    %cst = arith.constant dense<0.000000e+00> : vector<2x64xf32>
    %2 = tpu.matmul %0, %1, %cst {dimension_numbers = #tpu.dot_dimension_numbers<[1], [0], [0], [1], [0, 0, 1, 1], [], []>} : vector<2x64xf32>, vector<64x64xf32>, vector<2x64xf32> -> vector<2x64xf32>
    %c0_3 = arith.constant 0 : index
    %c0_4 = arith.constant 0 : index
    %3 = vector.load %arg2[%c0_3, %c0_4] : memref<1x64xf32, #tpu.memory_space<vmem>>, vector<1x64xf32>
    %4 = vector.broadcast %3 : vector<1x64xf32> to vector<2x64xf32>
    %5 = arith.addf %2, %4 : vector<2x64xf32>
    %c0_5 = arith.constant 0 : index
    %c0_6 = arith.constant 0 : index
    %6 = vector.load %arg3[%c0_5, %c0_6] : memref<64x48xf32, #tpu.memory_space<vmem>>, vector<64x48xf32>
    %cst_7 = arith.constant dense<0.000000e+00> : vector<2x48xf32>
    %7 = tpu.matmul %5, %6, %cst_7 {dimension_numbers = #tpu.dot_dimension_numbers<[1], [0], [0], [1], [0, 0, 1, 1], [], []>} : vector<2x64xf32>, vector<64x48xf32>, vector<2x48xf32> -> vector<2x48xf32>
    %c0_8 = arith.constant 0 : index
    %c0_9 = arith.constant 0 : index
    %8 = vector.load %arg4[%c0_8, %c0_9] : memref<1x48xf32, #tpu.memory_space<vmem>>, vector<1x48xf32>
    %9 = vector.broadcast %8 : vector<1x48xf32> to vector<2x48xf32>
    %10 = arith.addf %7, %9 : vector<2x48xf32>
    %11 = vector.extract_strided_slice %10 {offsets = [0, 0], sizes = [2, 32], strides = [1, 1]} : vector<2x48xf32> to vector<2x32xf32>
    %12 = vector.extract_strided_slice %10 {offsets = [0, 32], sizes = [2, 16], strides = [1, 1]} : vector<2x48xf32> to vector<2x16xf32>
    %c0_10 = arith.constant 0 : index
    %c0_11 = arith.constant 0 : index
    %13 = vector.load %arg7[%c0_10, %c0_11] : memref<2x16xf32, #tpu.memory_space<vmem>>, vector<2x16xf32>
    tpu.vector_store %arg7[%c0_10, %c0_11], %12 {strides = array<i32>} : memref<2x16xf32, #tpu.memory_space<vmem>>, vector<2x16xf32>,
    %cst_12 = arith.constant dense<0.000000e+00> : vector<2xf32>
    %14 = vector.multi_reduction <add>, %11, %cst_12 [1] : vector<2x32xf32> to vector<2xf32>
    %15 = vector.shape_cast %14 : vector<2xf32> to vector<2x1xf32>
    %cst_13 = arith.constant 3.200000e+01 : f32
    %16 = vector.broadcast %cst_13 : f32 to vector<2x1xf32>
    %17 = arith.divf %15, %16 : vector<2x1xf32>
    %18 = vector.broadcast %17 : vector<2x1xf32> to vector<2x32xf32>
    %19 = arith.subf %11, %18 : vector<2x32xf32>
    %20 = arith.mulf %19, %19 : vector<2x32xf32>
    %cst_14 = arith.constant dense<0.000000e+00> : vector<2xf32>
    %21 = vector.multi_reduction <add>, %20, %cst_14 [1] : vector<2x32xf32> to vector<2xf32>
    %22 = vector.shape_cast %21 : vector<2xf32> to vector<2x1xf32>
    %cst_15 = arith.constant 3.200000e+01 : f32
    %23 = vector.broadcast %cst_15 : f32 to vector<2x1xf32>
    %24 = arith.divf %22, %23 : vector<2x1xf32>
    %25 = vector.broadcast %17 : vector<2x1xf32> to vector<2x32xf32>
    %26 = arith.subf %11, %25 : vector<2x32xf32>
    %cst_16 = arith.constant 9.99999997E-7 : f32
    %27 = vector.broadcast %cst_16 : f32 to vector<2x1xf32>
    %28 = arith.addf %24, %27 : vector<2x1xf32>
    %29 = math.rsqrt %28 : vector<2x1xf32>
    %30 = vector.broadcast %29 : vector<2x1xf32> to vector<2x32xf32>
    %31 = arith.mulf %26, %30 : vector<2x32xf32>
    %c0_17 = arith.constant 0 : index
    %c0_18 = arith.constant 0 : index
    %32 = vector.load %arg5[%c0_17, %c0_18] : memref<1x32xf32, #tpu.memory_space<vmem>>, vector<1x32xf32>
    %33 = vector.broadcast %32 : vector<1x32xf32> to vector<2x32xf32>
    %34 = arith.mulf %31, %33 : vector<2x32xf32>
    %c0_19 = arith.constant 0 : index
    %c0_20 = arith.constant 0 : index
    %35 = vector.load %arg6[%c0_19, %c0_20] : memref<1x32xf32, #tpu.memory_space<vmem>>, vector<1x32xf32>
    %36 = vector.broadcast %35 : vector<1x32xf32> to vector<2x32xf32>
    %37 = arith.addf %34, %36 : vector<2x32xf32>
    %c0_21 = arith.constant 0 : index
    %c0_22 = arith.constant 0 : index
    %38 = vector.load %arg8[%c0_21, %c0_22] : memref<2x32xf32, #tpu.memory_space<vmem>>, vector<2x32xf32>
    tpu.vector_store %arg8[%c0_21, %c0_22], %37 {strides = array<i32>} : memref<2x32xf32, #tpu.memory_space<vmem>>, vector<2x32xf32>,
    return
  }
}

</mosaic_0001>

<llo_original>
// kernel: encoder_cnn_forward.2
$region0: #{encoder_cnn_forward.2}
  #allocation0 [shape = 'u32[]', space=smem, size = 0x4, offset = 0x4, fixed_abs, tag = 'smem constant byte address 0x4 - core index']
  #allocation1 [shape = 'u32[144,128]{1,0:T(1,128)}', space=vmem, size = 0x12000, scoped, tag = 'internal scratch']
  #allocation2 [shape = 'f32[5,128]{1,0:T(8,128)}', space=vmem, size = 0x1000, scoped, tag = 'scratch operand']
  %s0 = inlined_call_operand.vmem [shape: f32[2,4,256], index: 0, kind: input, shape index: {}]
  %s1 = inlined_call_operand.vmem [shape: f32[2,4,256], index: 1, kind: input, shape index: {}]
  %s2 = inlined_call_operand.vmem [shape: bf16[2,32,5], index: 2, kind: input, shape index: {}]
  %s3 = inlined_call_operand.vmem [shape: f32[2,32,2], index: 3, kind: output, shape index: {}]
  %s4 = sld [smem:[#allocation0]]
  $region49: #{encoder_cnn_forward.2} parent=0
    _
  %s6 = ssub.s32 1, %s4
  %s7 = scalar_select 0, %s6, %s4
  loop: start=0, step=1, limit=6
  $region2: #{encoder_cnn_forward.2} parent=0 // loop_pre_header
    _
  $region3: #{encoder_cnn_forward.2} parent=0 // loop_header
    %s9 = sphi 0, %s13
    %p10 = scmp.ge.s32.totalorder %s9, 6
    %s16 = sphi 0, %s28
    %s17 = sphi 0, %s24
    %s18 = sphi 0, %s16
    %s19 = sphi 0, %s17
    %s20 = sphi 0, %s18
    %s21 = sphi 0, %s19
    %s33 = sphi 0, %s35
    %s36 = sphi 0, %s33
    %s37 = sphi 0, %s36
    %s53 = sphi 0, %s37
    %s61 = sphi 0, %s63
    %s64 = sphi 0, %s61
    %s65 = sphi 0, %s64
    %s81 = sphi 0, %s65
    %s85 = sphi 0, %s85
    %s87 = sphi 0, %s85
    %s88 = sphi 0, %s87
    %s102 = sphi 0, %s88
    %s108 = sphi 0, %s110
    %s111 = sphi 0, %s108
    %s112 = sphi 0, %s111
    %s128 = sphi 0, %s112
  $region4: #{encoder_cnn_forward.2} parent=0 // loop_header_branch
    %12 = sbr.rel (%p10) target = $region8
  $region5: #{encoder_cnn_forward.2} parent=0 // loop_body
    %s14 = ssub.s32 %s9, 1
    %s15 = ssub.s32 %s9, 2
    %s22 = sadd.s32 1, %s17
    %p23 = scmp.ge.s32.totalorder %s22, 2
    %s24 = scalar_select %p23, 0, %s22
    %s25 = sadd.s32 1, %s16
    %s26 = scalar_select %p23, %s25, %s16
    %p27 = scmp.ge.s32.totalorder %s26, 2
    %s28 = scalar_select %p27, 0, %s26
    %s29 = ssub.s32 %s16, %s28
    %s30 = ssub.s32 %s17, %s24
    %s31 = sor.u32 %s29, %s30
    %p32 = scmp.eq.s32.totalorder %s31, 0
    %s34 = sadd.s32 %s33, 1
    %s35 = scalar_select %p32, %s33, %s34
    %p38 = pneg %p32
    %p39 = scmp.eq.s32.totalorder %s9, 3
    %p40 = por %p38, %p39
    %p41 = scmp.ne.s32.totalorder %s33, %s36
    %p42 = scmp.eq.s32.totalorder %s9, 0
    %p43 = por %p41, %p42
    %p44 = scmp.ne.s32.totalorder %s33, %s36
    %p45 = scmp.eq.s32.totalorder %s14, 3
    %p46 = por %p44, %p45
    %p47 = scmp.ne.s32.totalorder %s36, %s37
    %p48 = scmp.eq.s32.totalorder %s14, 0
    %p49 = por %p47, %p48
    %p50 = scmp.ne.s32.totalorder %s36, %s37
    %p51 = scmp.eq.s32.totalorder %s15, 3
    %p52 = por %p50, %p51
    %p54 = scmp.ne.s32.totalorder %s37, %s53
    %p55 = scmp.eq.s32.totalorder %s15, 0
    %p56 = por %p54, %p55
    %s57 = ssub.s32 %s16, %s28
    %s58 = ssub.s32 %s17, %s24
    %s59 = sor.u32 %s57, %s58
    %p60 = scmp.eq.s32.totalorder %s59, 0
    %s62 = sadd.s32 %s61, 1
    %s63 = scalar_select %p60, %s61, %s62
    %p66 = pneg %p60
    %p67 = scmp.eq.s32.totalorder %s9, 3
    %p68 = por %p66, %p67
    %p69 = scmp.ne.s32.totalorder %s61, %s64
    %p70 = scmp.eq.s32.totalorder %s9, 0
    %p71 = por %p69, %p70
    %p72 = scmp.ne.s32.totalorder %s61, %s64
    %p73 = scmp.eq.s32.totalorder %s14, 3
    %p74 = por %p72, %p73
    %p75 = scmp.ne.s32.totalorder %s64, %s65
    %p76 = scmp.eq.s32.totalorder %s14, 0
    %p77 = por %p75, %p76
    %p78 = scmp.ne.s32.totalorder %s64, %s65
    %p79 = scmp.eq.s32.totalorder %s15, 3
    %p80 = por %p78, %p79
    %p82 = scmp.ne.s32.totalorder %s65, %s81
    %p83 = scmp.eq.s32.totalorder %s15, 0
    %p84 = por %p82, %p83
    %s86 = sadd.s32 %s85, 1
    %p89 = scmp.eq.s32.totalorder %s9, 3
    %p90 = scmp.ne.s32.totalorder %s85, %s87
    %p91 = scmp.eq.s32.totalorder %s9, 0
    %p92 = por %p90, %p91
    %p93 = scmp.ne.s32.totalorder %s85, %s87
    %p94 = scmp.eq.s32.totalorder %s14, 3
    %p95 = por %p93, %p94
    %p96 = scmp.ne.s32.totalorder %s87, %s88
    %p97 = scmp.eq.s32.totalorder %s14, 0
    %p98 = por %p96, %p97
    %p99 = scmp.ne.s32.totalorder %s87, %s88
    %p100 = scmp.eq.s32.totalorder %s15, 3
    %p101 = por %p99, %p100
    %p103 = scmp.ne.s32.totalorder %s88, %s102
    %p104 = scmp.eq.s32.totalorder %s15, 0
    %p105 = por %p103, %p104
    %s106 = ssub.s32 %s16, %s28
    %p107 = scmp.eq.s32.totalorder %s106, 0
    %s109 = sadd.s32 %s108, 1
    %s110 = scalar_select %p107, %s108, %s109
    %p113 = pneg %p107
    %p114 = scmp.eq.s32.totalorder %s9, 3
    %p115 = por %p113, %p114
    %p116 = scmp.ne.s32.totalorder %s108, %s111
    %p117 = scmp.eq.s32.totalorder %s9, 0
    %p118 = por %p116, %p117
    %p119 = scmp.ne.s32.totalorder %s108, %s111
    %p120 = scmp.eq.s32.totalorder %s14, 3
    %p121 = por %p119, %p120
    %p122 = scmp.ne.s32.totalorder %s111, %s112
    %p123 = scmp.eq.s32.totalorder %s14, 0
    %p124 = por %p122, %p123
    %p125 = scmp.ne.s32.totalorder %s111, %s112
    %p126 = scmp.eq.s32.totalorder %s15, 3
    %p127 = por %p125, %p126
    %p129 = scmp.ne.s32.totalorder %s112, %s128
    %p130 = scmp.eq.s32.totalorder %s15, 0
    %p131 = por %p129, %p130
    %p132 = scmp.le.s32.totalorder 1, %s9
    %p133 = scmp.lt.s32.totalorder %s9, 5
    %p134 = pnand %p132, %p133
    %p135 = pneg %p134
    // Predicated region
    $region9: #{encoder_cnn_forward.2} parent=5 // pred_check
      _
    $region10: #{encoder_cnn_forward.2} parent=5 // pred_check_branch
      %137 = sbr.rel (%p134) target = $region12
    $region11: #{encoder_cnn_forward.2} parent=5 // pred_region
      %s138 = ssub.s32 %s9, 1
      // Predicated region
      $region13: #{encoder_cnn_forward.2} parent=11 // pred_check
        %p139 = pneg %p98
      $region14: #{encoder_cnn_forward.2} parent=11 // pred_check_branch
        %141 = sbr.rel (%p139) target = $region16
      $region15: #{encoder_cnn_forward.2} parent=11 // pred_region
        _
      $region16: #{encoder_cnn_forward.2} parent=11 // pred_fallthru
        _
    $region12: #{encoder_cnn_forward.2} parent=5 // pred_fallthru
      _
    %p142 = scmp.lt.s32.totalorder %s9, 4
    // Predicated region
    $region17: #{encoder_cnn_forward.2} parent=5 // pred_check
      %p143 = pneg %p142
    $region18: #{encoder_cnn_forward.2} parent=5 // pred_check_branch
      %145 = sbr.rel (%p143) target = $region20
    $region19: #{encoder_cnn_forward.2} parent=5 // pred_region
      // Predicated region
      $region21: #{encoder_cnn_forward.2} parent=19 // pred_check
        %p146 = pneg %p43
      $region22: #{encoder_cnn_forward.2} parent=19 // pred_check_branch
        %148 = sbr.rel (%p146) target = $region24
      $region23: #{encoder_cnn_forward.2} parent=19 // pred_region
        %p149 = scmp.lt.s32.totalorder %s16, 1
        %s150 = scalar_select %p149, %s16, 1
        %p151 = scmp.lt.s32.totalorder %s17, 1
        %s152 = scalar_select %p151, %s17, 1
        %s153 = smul.addr %s150, 2
        %s154 = sadd.s32 %s152, %s153
        %s155 = smul.addr %s154, 4
        %s156 = scalar_lea.vmem %s0, %s155
      $region24: #{encoder_cnn_forward.2} parent=19 // pred_fallthru
        _
      // Predicated region
      $region25: #{encoder_cnn_forward.2} parent=19 // pred_check
        %p157 = pneg %p71
      $region26: #{encoder_cnn_forward.2} parent=19 // pred_check_branch
        %159 = sbr.rel (%p157) target = $region28
      $region27: #{encoder_cnn_forward.2} parent=19 // pred_region
        %p160 = scmp.lt.s32.totalorder %s16, 1
        %s161 = scalar_select %p160, %s16, 1
        %p162 = scmp.lt.s32.totalorder %s17, 1
        %s163 = scalar_select %p162, %s17, 1
        %s164 = smul.addr %s161, 2
        %s165 = sadd.s32 %s163, %s164
        %s166 = smul.addr %s165, 4
        %s167 = scalar_lea.vmem %s1, %s166
      $region28: #{encoder_cnn_forward.2} parent=19 // pred_fallthru
        _
    $region20: #{encoder_cnn_forward.2} parent=5 // pred_fallthru
      _
    %p168 = scmp.le.s32.totalorder 1, %s9
    %p169 = scmp.lt.s32.totalorder %s9, 5
    %p170 = pnand %p168, %p169
    %p171 = pneg %p170
    // Predicated region
    $region29: #{encoder_cnn_forward.2} parent=5 // pred_check
      _
    $region30: #{encoder_cnn_forward.2} parent=5 // pred_check_branch
      %173 = sbr.rel (%p170) target = $region32
    $region31: #{encoder_cnn_forward.2} parent=5 // pred_region
      %s174 = ssub.s32 %s9, 1
      %p175 = scmp.lt.s32.totalorder %s18, 1
      %s176 = scalar_select %p175, %s18, 1
      %p177 = scmp.lt.s32.totalorder %s19, 1
      %s178 = scalar_select %p177, %s19, 1
      %s179 = smul.addr %s176, 2
      %s180 = sadd.s32 %s178, %s179
      %s181 = smul.addr %s180, 4
      %s182 = scalar_lea.vmem %s0, %s181
      %p183 = pneg %p49
      %p184 = pneg %p46
      %p185 = scmp.lt.s32.totalorder %s18, 1
      %s186 = scalar_select %p185, %s18, 1
      %p187 = scmp.lt.s32.totalorder %s19, 1
      %s188 = scalar_select %p187, %s19, 1
      %s189 = smul.addr %s186, 2
      %s190 = sadd.s32 %s188, %s189
      %s191 = smul.addr %s190, 4
      %s192 = scalar_lea.vmem %s1, %s191
      %p193 = pneg %p77
      %p194 = pneg %p74
      %p195 = pneg %p98
      %p196 = pneg %p95
      %p197 = pneg %p124
      %p198 = pneg %p121
      %p199 = scmp.lt.s32.totalorder %s18, 1
      %s200 = scalar_select %p199, %s18, 1
      %s201 = smul.addr %s200, 4
      %s202 = smul.addr %s201, 8
      %s203 = scalar_lea.vmem %s3, %s202
      %p204 = scmp.lt.s32.totalorder %s18, 1
      %s205 = scalar_select %p204, %s18, 1
      %p206 = scmp.lt.s32.totalorder %s19, 1
      %s207 = scalar_select %p206, %s19, 1
      %s208 = smul.addr %s205, 2
      %s209 = sadd.s32 %s207, %s208
      %s210 = smul.addr %s209, 4
      %s211 = scalar_lea.vmem %s0, %s210
      %p212 = scmp.lt.s32.totalorder %s18, 1
      %s213 = scalar_select %p212, %s18, 1
      %p214 = scmp.lt.s32.totalorder %s19, 1
      %s215 = scalar_select %p214, %s19, 1
      %s216 = smul.addr %s213, 2
      %s217 = sadd.s32 %s215, %s216
      %s218 = smul.addr %s217, 4
      %s219 = scalar_lea.vmem %s1, %s218
      %p220 = scmp.lt.s32.totalorder %s18, 1
      %s221 = scalar_select %p220, %s18, 1
      %s222 = smul.addr %s221, 4
      %s223 = smul.addr %s222, 8
      %s224 = scalar_lea.vmem %s3, %s223
      %p226 = scmp.eq.s32.totalorder %s19, 0
      // Predicated region
      $region33: #{encoder_cnn_forward.2} parent=31 // pred_check
        %p227 = pneg %p226
      $region34: #{encoder_cnn_forward.2} parent=31 // pred_check_branch
        %229 = sbr.rel (%p227) target = $region36
      $region35: #{encoder_cnn_forward.2} parent=31 // pred_region
        %vm230 = vcmask 15360
        %231 = vst.msk [vmem:[%s224] sm:$0xff] %vm230, 0.0
        %232 = vst.msk [vmem:[%s224 + $0x8] sm:$0xff] %vm230, 0.0
        %233 = vst.msk [vmem:[%s224 + $0x10] sm:$0xff] %vm230, 0.0
        %234 = vst.msk [vmem:[%s224 + $0x18] sm:$0xff] %vm230, 0.0
      $region36: #{encoder_cnn_forward.2} parent=31 // pred_fallthru
        _
      %235 = vst [vmem:[#allocation2 + $0x4] sm:$0x1] 1.0
      %v236 = vld [vmem:[%s2] sm:$0xf]
      %v237 = vld [vmem:[%s2 + $0x4] sm:$0xf]
      %v238 = vld [vmem:[%s2 + $0x8] sm:$0xf]
      %v239 = vld [vmem:[%s2 + $0xc] sm:$0xf]
      %v240 = vld [vmem:[%s211] sm:$0xf]
      %241 = vst [vmem:[#allocation2] sm:$0xf] %v240
      %v242 = vld [vmem:[#allocation2] sm:$0x1f]
      %v243 = vpack.c.bf16 %v242, %v242
      %v248 = vunpack.c.l.b16 %v236
      %v249 = vunpack.c.l.b16 %v237
      %v250 = vunpack.c.l.b16 %v238
      %v251 = vunpack.c.l.b16 %v239
      %v252 = vpack.c.b16 %v249, %v248
      %v253 = vpack.c.b16 %v251, %v250
      %vm254 = vcmask 39936
      %v256 = vsel %vm254, %v252, 0
      %v259 = vsel %vm254, %v253, 0
      %vm261 = vcmask 1041408
      %vm262 = vcmask 1042432
      %v263 = vsel %vm261, 4294967295, 65535
      %v264 = vsel %vm262, %v263, 0
      %v266 = vand.u32 %v243, %v264
      %268 = vmatprep.subr.bf16.mxu0 0
      %269 = vmatpush1.bf16.msra.mxu0 %v266
      %270 = vmatprep.subr.bf16.mxu0 0
      %271 = vmatpush1.bf16.msra.mxu0 0
      %272 = vmatprep.subr.bf16.mxu0 0
      %273 = vmatpush1.bf16.msra.mxu0 0
      %274 = vmatprep.subr.bf16.mxu0 0
      %275 = vmatpush1.bf16.msra.mxu0 0
      %276 = vmatprep.subr.bf16.mxu0 0
      %277 = vmatpush1.bf16.msra.mxu0 0
      %278 = vmatprep.subr.bf16.mxu0 0
      %279 = vmatpush1.bf16.msra.mxu0 0
      %280 = vmatprep.subr.bf16.mxu0 0
      %281 = vmatpush1.bf16.msra.mxu0 0
      %282 = vmatprep.subr.bf16.mxu0 0
      %283 = vmatpush1.bf16.msra.mxu0 0
      %284 = vmatprep.subr.bf16.mxu0 0
      %285 = vmatpush1.bf16.msra.mxu0 0
      %286 = vmatprep.subr.bf16.mxu0 0
      %287 = vmatpush1.bf16.msra.mxu0 0
      %288 = vmatprep.subr.bf16.mxu0 0
      %289 = vmatpush1.bf16.msra.mxu0 0
      %290 = vmatprep.subr.bf16.mxu0 0
      %291 = vmatpush1.bf16.msra.mxu0 0
      %292 = vmatprep.subr.bf16.mxu0 0
      %293 = vmatpush1.bf16.msra.mxu0 0
      %294 = vmatprep.subr.bf16.mxu0 0
      %295 = vmatpush1.bf16.msra.mxu0 0
      %296 = vmatprep.subr.bf16.mxu0 0
      %297 = vmatpush1.bf16.msra.mxu0 0
      %298 = vmatprep.subr.bf16.mxu0 0
      %299 = vmatpush1.bf16.msra.mxu0 0
      %300 = vmatprep.mubr.bf16.mxu0 0
      %301 = vmatmul.mubr.bf16.gmra.mrb[0].mxu0 %v256
      %v302 = vpop.f32.mrb[0].mxu0
      %v303 = vadd.f32 0.0, %v302
      %v304 = vpop.f32.mrb[0].mxu0
      %v305 = vpop.f32.mrb[0].mxu0
      %v306 = vadd.f32 0.0, %v305
      %v307 = vpop.f32.mrb[0].mxu0
      %308 = vmatprep.mubr.bf16.mxu0 0
      %309 = vmatmul.mubr.bf16.gmra.mrb[0].mxu0 %v259
      %v310 = vpop.f32.mrb[0].mxu0
      %v311 = vadd.f32 0.0, %v310
      %v312 = vpop.f32.mrb[0].mxu0
      %v313 = vpop.f32.mrb[0].mxu0
      %v314 = vadd.f32 0.0, %v313
      %v315 = vpop.f32.mrb[0].mxu0
      %316 = vdwg.mxu0
      %v317 = vmax.f32 %v303, 0.0
      %v318 = vmax.f32 %v306, 0.0
      %v319 = vmax.f32 %v311, 0.0
      %v320 = vmax.f32 %v314, 0.0
      %v321 = vld [vmem:[%s224] sm:$0xff]
      %v322 = vld [vmem:[%s224 + $0x8] sm:$0xff]
      %v323 = vld [vmem:[%s224 + $0x10] sm:$0xff]
      %v324 = vld [vmem:[%s224 + $0x18] sm:$0xff]
      %325 = vmatprep.subr.mxu0 0.0
      %326 = vmatpush1.msra.mxu0 0.00390625
      %327 = vmatprep.subr.mxu0 0.0
      %328 = vmatpush1.msra.mxu0 0.00390625
      %329 = vmatprep.subr.mxu0 0.0
      %330 = vmatpush1.msra.mxu0 0.00390625
      %331 = vmatprep.subr.mxu0 0.0
      %332 = vmatpush1.msra.mxu0 0.00390625
      %333 = vmatprep.subr.mxu0 0.0
      %334 = vmatpush1.msra.mxu0 0.00390625
      %335 = vmatprep.subr.mxu0 0.0
      %336 = vmatpush1.msra.mxu0 0.00390625
      %337 = vmatprep.subr.mxu0 0.0
      %338 = vmatpush1.msra.mxu0 0.00390625
      %339 = vmatprep.subr.mxu0 0.0
      %340 = vmatpush1.msra.mxu0 0.00390625
      %341 = vmatprep.subr.mxu0 0.0
      %342 = vmatpush1.msra.mxu0 0.00390625
      %343 = vmatprep.subr.mxu0 0.0
      %344 = vmatpush1.msra.mxu0 0.00390625
      %345 = vmatprep.subr.mxu0 0.0
      %346 = vmatpush1.msra.mxu0 0.00390625
      %347 = vmatprep.subr.mxu0 0.0
      %348 = vmatpush1.msra.mxu0 0.00390625
      %349 = vmatprep.subr.mxu0 0.0
      %350 = vmatpush1.msra.mxu0 0.00390625
      %351 = vmatprep.subr.mxu0 0.0
      %352 = vmatpush1.msra.mxu0 0.00390625
      %353 = vmatprep.subr.mxu0 0.0
      %354 = vmatpush1.msra.mxu0 0.00390625
      %355 = vmatprep.subr.mxu0 0.0
      %356 = vmatpush1.msra.mxu0 0.00390625
      %357 = vmatprep.subr.mxu0 0.0
      %358 = vmatpush1.msra.mxu0 0.0
      %359 = vmatprep.subr.mxu0 0.0
      %360 = vmatpush1.msra.mxu0 0.0
      %361 = vmatprep.subr.mxu0 0.0
      %362 = vmatpush1.msra.mxu0 0.0
      %363 = vmatprep.subr.mxu0 0.0
      %364 = vmatpush1.msra.mxu0 0.0
      %365 = vmatprep.subr.mxu0 0.0
      %366 = vmatpush1.msra.mxu0 0.0
      %367 = vmatprep.subr.mxu0 0.0
      %368 = vmatpush1.msra.mxu0 0.0
      %369 = vmatprep.subr.mxu0 0.0
      %370 = vmatpush1.msra.mxu0 0.0
      %371 = vmatprep.subr.mxu0 0.0
      %372 = vmatpush1.msra.mxu0 0.0
      %373 = vmatprep.subr.mxu0 0.0
      %374 = vmatpush1.msra.mxu0 0.0
      %375 = vmatprep.subr.mxu0 0.0
      %376 = vmatpush1.msra.mxu0 0.0
      %377 = vmatprep.subr.mxu0 0.0
      %378 = vmatpush1.msra.mxu0 0.0
      %379 = vmatprep.subr.mxu0 0.0
      %380 = vmatpush1.msra.mxu0 0.0
      %381 = vmatprep.subr.mxu0 0.0
      %382 = vmatpush1.msra.mxu0 0.0
      %383 = vmatprep.subr.mxu0 0.0
      %384 = vmatpush1.msra.mxu0 0.0
      %385 = vmatprep.subr.mxu0 0.0
      %386 = vmatpush1.msra.mxu0 0.0
      %387 = vmatprep.subr.mxu0 0.0
      %388 = vmatpush1.msra.mxu0 0.0
      %389 = vmatprep.mubr.f32.mxu0 0.0
      %390 = vmatmul.mubr.f32.gmra.mrb[0].mxu0 %v317
      %v391 = vpop.f32.mrb[0].mxu0
      %v392 = vadd.f32 0.0, %v391
      %v393 = vpop.f32.mrb[0].mxu0
      %394 = vmatprep.mubr.f32.mxu0 0.0
      %395 = vmatmul.mubr.f32.gmra.mrb[0].mxu0 %v318
      %v396 = vpop.f32.mrb[0].mxu0
      %v397 = vadd.f32 0.0, %v396
      %v398 = vpop.f32.mrb[0].mxu0
      %399 = vmatprep.mubr.f32.mxu0 0.0
      %400 = vmatmul.mubr.f32.gmra.mrb[0].mxu0 %v319
      %v401 = vpop.f32.mrb[0].mxu0
      %v402 = vadd.f32 0.0, %v401
      %v403 = vpop.f32.mrb[0].mxu0
      %404 = vmatprep.mubr.f32.mxu0 0.0
      %405 = vmatmul.mubr.f32.gmra.mrb[0].mxu0 %v320
      %v406 = vpop.f32.mrb[0].mxu0
      %v407 = vadd.f32 0.0, %v406
      %v408 = vpop.f32.mrb[0].mxu0
      %409 = vdwg.mxu0
      %v410 = vadd.f32 %v321, %v392
      %v411 = vadd.f32 %v322, %v397
      %v412 = vadd.f32 %v323, %v402
      %v413 = vadd.f32 %v324, %v407
      %vm414 = vcmask 7168
      %415 = vst.msk [vmem:[%s224] sm:$0xff] %vm414, %v410
      %416 = vst.msk [vmem:[%s224 + $0x8] sm:$0xff] %vm414, %v411
      %417 = vst.msk [vmem:[%s224 + $0x10] sm:$0xff] %vm414, %v412
      %418 = vst.msk [vmem:[%s224 + $0x18] sm:$0xff] %vm414, %v413
      %s419 = scalar_lea.vmem %s2, 16
      %v420 = vld [vmem:[%s419] sm:$0xf]
      %v421 = vld [vmem:[%s419 + $0x4] sm:$0xf]
      %v422 = vld [vmem:[%s419 + $0x8] sm:$0xf]
      %v423 = vld [vmem:[%s419 + $0xc] sm:$0xf]
      %v424 = vld [vmem:[%s219] sm:$0xf]
      %425 = vst [vmem:[#allocation2] sm:$0xf] %v424
      %v426 = vld [vmem:[#allocation2] sm:$0x1f]
      %v427 = vpack.c.bf16 %v426, %v426
      %v432 = vunpack.c.l.b16 %v420
      %v433 = vunpack.c.l.b16 %v421
      %v434 = vunpack.c.l.b16 %v422
      %v435 = vunpack.c.l.b16 %v423
      %v436 = vpack.c.b16 %v433, %v432
      %v437 = vpack.c.b16 %v435, %v434
      %v439 = vsel %vm254, %v436, 0
      %v442 = vsel %vm254, %v437, 0
      %v445 = vand.u32 %v427, %v264
      %447 = vmatprep.subr.bf16.mxu0 0
      %448 = vmatpush1.bf16.msra.mxu0 %v445
      %449 = vmatprep.subr.bf16.mxu0 0
      %450 = vmatpush1.bf16.msra.mxu0 0
      %451 = vmatprep.subr.bf16.mxu0 0
      %452 = vmatpush1.bf16.msra.mxu0 0
      %453 = vmatprep.subr.bf16.mxu0 0
      %454 = vmatpush1.bf16.msra.mxu0 0
      %455 = vmatprep.subr.bf16.mxu0 0
      %456 = vmatpush1.bf16.msra.mxu0 0
      %457 = vmatprep.subr.bf16.mxu0 0
      %458 = vmatpush1.bf16.msra.mxu0 0
      %459 = vmatprep.subr.bf16.mxu0 0
      %460 = vmatpush1.bf16.msra.mxu0 0
      %461 = vmatprep.subr.bf16.mxu0 0
      %462 = vmatpush1.bf16.msra.mxu0 0
      %463 = vmatprep.subr.bf16.mxu0 0
      %464 = vmatpush1.bf16.msra.mxu0 0
      %465 = vmatprep.subr.bf16.mxu0 0
      %466 = vmatpush1.bf16.msra.mxu0 0
      %467 = vmatprep.subr.bf16.mxu0 0
      %468 = vmatpush1.bf16.msra.mxu0 0
      %469 = vmatprep.subr.bf16.mxu0 0
      %470 = vmatpush1.bf16.msra.mxu0 0
      %471 = vmatprep.subr.bf16.mxu0 0
      %472 = vmatpush1.bf16.msra.mxu0 0
      %473 = vmatprep.subr.bf16.mxu0 0
      %474 = vmatpush1.bf16.msra.mxu0 0
      %475 = vmatprep.subr.bf16.mxu0 0
      %476 = vmatpush1.bf16.msra.mxu0 0
      %477 = vmatprep.subr.bf16.mxu0 0
      %478 = vmatpush1.bf16.msra.mxu0 0
      %479 = vmatprep.mubr.bf16.mxu0 0
      %480 = vmatmul.mubr.bf16.gmra.mrb[0].mxu0 %v439
      %v481 = vpop.f32.mrb[0].mxu0
      %v482 = vadd.f32 0.0, %v481
      %v483 = vpop.f32.mrb[0].mxu0
      %v484 = vpop.f32.mrb[0].mxu0
      %v485 = vadd.f32 0.0, %v484
      %v486 = vpop.f32.mrb[0].mxu0
      %487 = vmatprep.mubr.bf16.mxu0 0
      %488 = vmatmul.mubr.bf16.gmra.mrb[0].mxu0 %v442
      %v489 = vpop.f32.mrb[0].mxu0
      %v490 = vadd.f32 0.0, %v489
      %v491 = vpop.f32.mrb[0].mxu0
      %v492 = vpop.f32.mrb[0].mxu0
      %v493 = vadd.f32 0.0, %v492
      %v494 = vpop.f32.mrb[0].mxu0
      %495 = vdwg.mxu0
      %v496 = vmax.f32 %v482, 0.0
      %v497 = vmax.f32 %v485, 0.0
      %v498 = vmax.f32 %v490, 0.0
      %v499 = vmax.f32 %v493, 0.0
      %v500 = vld [vmem:[%s224] sm:$0xff]
      %v501 = vld [vmem:[%s224 + $0x8] sm:$0xff]
      %v502 = vld [vmem:[%s224 + $0x10] sm:$0xff]
      %v503 = vld [vmem:[%s224 + $0x18] sm:$0xff]
      %504 = vmatprep.subr.mxu0 0.0
      %505 = vmatpush1.msra.mxu0 0.00390625
      %506 = vmatprep.subr.mxu0 0.0
      %507 = vmatpush1.msra.mxu0 0.00390625
      %508 = vmatprep.subr.mxu0 0.0
      %509 = vmatpush1.msra.mxu0 0.00390625
      %510 = vmatprep.subr.mxu0 0.0
      %511 = vmatpush1.msra.mxu0 0.00390625
      %512 = vmatprep.subr.mxu0 0.0
      %513 = vmatpush1.msra.mxu0 0.00390625
      %514 = vmatprep.subr.mxu0 0.0
      %515 = vmatpush1.msra.mxu0 0.00390625
      %516 = vmatprep.subr.mxu0 0.0
      %517 = vmatpush1.msra.mxu0 0.00390625
      %518 = vmatprep.subr.mxu0 0.0
      %519 = vmatpush1.msra.mxu0 0.00390625
      %520 = vmatprep.subr.mxu0 0.0
      %521 = vmatpush1.msra.mxu0 0.00390625
      %522 = vmatprep.subr.mxu0 0.0
      %523 = vmatpush1.msra.mxu0 0.00390625
      %524 = vmatprep.subr.mxu0 0.0
      %525 = vmatpush1.msra.mxu0 0.00390625
      %526 = vmatprep.subr.mxu0 0.0
      %527 = vmatpush1.msra.mxu0 0.00390625
      %528 = vmatprep.subr.mxu0 0.0
      %529 = vmatpush1.msra.mxu0 0.00390625
      %530 = vmatprep.subr.mxu0 0.0
      %531 = vmatpush1.msra.mxu0 0.00390625
      %532 = vmatprep.subr.mxu0 0.0
      %533 = vmatpush1.msra.mxu0 0.00390625
      %534 = vmatprep.subr.mxu0 0.0
      %535 = vmatpush1.msra.mxu0 0.00390625
      %536 = vmatprep.subr.mxu0 0.0
      %537 = vmatpush1.msra.mxu0 0.0
      %538 = vmatprep.subr.mxu0 0.0
      %539 = vmatpush1.msra.mxu0 0.0
      %540 = vmatprep.subr.mxu0 0.0
      %541 = vmatpush1.msra.mxu0 0.0
      %542 = vmatprep.subr.mxu0 0.0
      %543 = vmatpush1.msra.mxu0 0.0
      %544 = vmatprep.subr.mxu0 0.0
      %545 = vmatpush1.msra.mxu0 0.0
      %546 = vmatprep.subr.mxu0 0.0
      %547 = vmatpush1.msra.mxu0 0.0
      %548 = vmatprep.subr.mxu0 0.0
      %549 = vmatpush1.msra.mxu0 0.0
      %550 = vmatprep.subr.mxu0 0.0
      %551 = vmatpush1.msra.mxu0 0.0
      %552 = vmatprep.subr.mxu0 0.0
      %553 = vmatpush1.msra.mxu0 0.0
      %554 = vmatprep.subr.mxu0 0.0
      %555 = vmatpush1.msra.mxu0 0.0
      %556 = vmatprep.subr.mxu0 0.0
      %557 = vmatpush1.msra.mxu0 0.0
      %558 = vmatprep.subr.mxu0 0.0
      %559 = vmatpush1.msra.mxu0 0.0
      %560 = vmatprep.subr.mxu0 0.0
      %561 = vmatpush1.msra.mxu0 0.0
      %562 = vmatprep.subr.mxu0 0.0
      %563 = vmatpush1.msra.mxu0 0.0
      %564 = vmatprep.subr.mxu0 0.0
      %565 = vmatpush1.msra.mxu0 0.0
      %566 = vmatprep.subr.mxu0 0.0
      %567 = vmatpush1.msra.mxu0 0.0
      %568 = vmatprep.mubr.f32.mxu0 0.0
      %569 = vmatmul.mubr.f32.gmra.mrb[0].mxu0 %v496
      %v570 = vpop.f32.mrb[0].mxu0
      %v571 = vadd.f32 0.0, %v570
      %v572 = vpop.f32.mrb[0].mxu0
      %573 = vmatprep.mubr.f32.mxu0 0.0
      %574 = vmatmul.mubr.f32.gmra.mrb[0].mxu0 %v497
      %v575 = vpop.f32.mrb[0].mxu0
      %v576 = vadd.f32 0.0, %v575
      %v577 = vpop.f32.mrb[0].mxu0
      %578 = vmatprep.mubr.f32.mxu0 0.0
      %579 = vmatmul.mubr.f32.gmra.mrb[0].mxu0 %v498
      %v580 = vpop.f32.mrb[0].mxu0
      %v581 = vadd.f32 0.0, %v580
      %v582 = vpop.f32.mrb[0].mxu0
      %583 = vmatprep.mubr.f32.mxu0 0.0
      %584 = vmatmul.mubr.f32.gmra.mrb[0].mxu0 %v499
      %v585 = vpop.f32.mrb[0].mxu0
      %v586 = vadd.f32 0.0, %v585
      %v587 = vpop.f32.mrb[0].mxu0
      %588 = vdwg.mxu0
      %593 = vrot.lane.b32.xlu0 %v571, 1
      %v594 = vpop.permute.xlu0 %593
      %595 = vrot.lane.b32.xlu0 %v576, 1
      %v596 = vpop.permute.xlu0 %595
      %597 = vrot.lane.b32.xlu0 %v581, 1
      %v598 = vpop.permute.xlu0 %597
      %599 = vrot.lane.b32.xlu0 %v586, 1
      %v600 = vpop.permute.xlu0 %599
      %v605 = vadd.f32 %v500, %v594
      %v606 = vadd.f32 %v501, %v596
      %v607 = vadd.f32 %v502, %v598
      %v608 = vadd.f32 %v503, %v600
      %vm609 = vcmask 15368
      %610 = vst.msk [vmem:[%s224] sm:$0xff] %vm609, %v605
      %611 = vst.msk [vmem:[%s224 + $0x8] sm:$0xff] %vm609, %v606
      %612 = vst.msk [vmem:[%s224 + $0x10] sm:$0xff] %vm609, %v607
      %613 = vst.msk [vmem:[%s224 + $0x18] sm:$0xff] %vm609, %v608
      %p614 = scmp.lt.s32.totalorder %s18, 1
      %s615 = scalar_select %p614, %s18, 1
      %s616 = smul.addr %s615, 4
      %s617 = smul.addr %s616, 8
      %s618 = scalar_lea.vmem %s3, %s617
      // Predicated region
      $region37: #{encoder_cnn_forward.2} parent=31 // pred_check
        %p619 = pneg %p121
      $region38: #{encoder_cnn_forward.2} parent=31 // pred_check_branch
        %621 = sbr.rel (%p619) target = $region40
      $region39: #{encoder_cnn_forward.2} parent=31 // pred_region
        _
      $region40: #{encoder_cnn_forward.2} parent=31 // pred_fallthru
        _
    $region32: #{encoder_cnn_forward.2} parent=5 // pred_fallthru
      _
    %p622 = scmp.le.s32.totalorder 2, %s9
    // Predicated region
    $region41: #{encoder_cnn_forward.2} parent=5 // pred_check
      %p623 = pneg %p622
    $region42: #{encoder_cnn_forward.2} parent=5 // pred_check_branch
      %625 = sbr.rel (%p623) target = $region44
    $region43: #{encoder_cnn_forward.2} parent=5 // pred_region
      %s626 = ssub.s32 %s9, 2
      // Predicated region
      $region45: #{encoder_cnn_forward.2} parent=43 // pred_check
        %p627 = pneg %p127
      $region46: #{encoder_cnn_forward.2} parent=43 // pred_check_branch
        %629 = sbr.rel (%p627) target = $region48
      $region47: #{encoder_cnn_forward.2} parent=43 // pred_region
        %p630 = scmp.lt.s32.totalorder %s20, 1
        %s631 = scalar_select %p630, %s20, 1
        %s632 = smul.addr %s631, 4
        %s633 = smul.addr %s632, 8
        %s634 = scalar_lea.vmem %s3, %s633
      $region48: #{encoder_cnn_forward.2} parent=43 // pred_fallthru
        _
    $region44: #{encoder_cnn_forward.2} parent=5 // pred_fallthru
      _
  $region6: #{encoder_cnn_forward.2} parent=0 // loop_footer
    %s13 = sadd.s32 1, %s9
  $region7: #{encoder_cnn_forward.2} parent=0 // loop_footer_branch
    %8 = sbr.rel target = $region3
  $region8: #{encoder_cnn_forward.2} parent=0 // loop_exit
    _

// kernel: encoder_cnn_forward.3
$region0: #{encoder_cnn_forward.3}
  #allocation0 [shape = 'u32[]', space=smem, size = 0x4, offset = 0x4, fixed_abs, tag = 'smem constant byte address 0x4 - core index']
  #allocation1 [shape = 'u32[144,128]{1,0:T(1,128)}', space=vmem, size = 0x12000, scoped, tag = 'internal scratch']
  %s0 = inlined_call_operand.vmem [shape: f32[2,64], index: 0, kind: input, shape index: {}]
  %s1 = inlined_call_operand.vmem [shape: f32[64,64], index: 1, kind: input, shape index: {}]
  %s2 = inlined_call_operand.vmem [shape: f32[1,64], index: 2, kind: input, shape index: {}]
  %s3 = inlined_call_operand.vmem [shape: f32[64,48], index: 3, kind: input, shape index: {}]
  %s4 = inlined_call_operand.vmem [shape: f32[1,48], index: 4, kind: input, shape index: {}]
  %s5 = inlined_call_operand.vmem [shape: f32[1,32], index: 5, kind: input, shape index: {}]
  %s6 = inlined_call_operand.vmem [shape: f32[1,32], index: 6, kind: input, shape index: {}]
  %s7 = inlined_call_operand.hbm [shape: f32[2,16], index: 7, kind: output, shape index: {0}]
  %s8 = inlined_call_operand.hbm [shape: f32[2,32], index: 8, kind: output, shape index: {1}]
  %9 = xla_tuple %s7, %s8
  %s10 = sld [smem:[#allocation0]]
  $region46: #{encoder_cnn_forward.3} parent=0
    _
  %s12 = ssub.s32 1, %s10
  %s13 = scalar_select 0, %s12, %s10
  $region1: #{encoder_cnn_forward.3} parent=0
    #allocation2 [shape = 'u8[1024]{0}', space=vmem, size = 0x400, scoped, tag = 'output window, operand 0, single buffered']
    #allocation3 [shape = 's32[1]{0}', space=sflag, size = 0x4, scoped, tag = 'scoped memory for encoder_cnn_forward.3']
    #allocation4 [shape = 'u8[1024]{0}', space=vmem, size = 0x400, scoped, tag = 'output window, operand 1, single buffered']
    #allocation5 [shape = 's32[1]{0}', space=sflag, size = 0x4, scoped, tag = 'scoped memory for encoder_cnn_forward.3']
    %14 = vsyncpa [#allocation3], 0
    %15 = vsyncpa [#allocation5], 0
    // Predicated region
    $region2: #{encoder_cnn_forward.3} parent=1 // pred_check
      _
    $region3: #{encoder_cnn_forward.3} parent=1 // pred_check_branch
      %17 = sbr.rel (0) target = $region5
    $region4: #{encoder_cnn_forward.3} parent=1 // pred_region
      _
    $region5: #{encoder_cnn_forward.3} parent=1 // pred_fallthru
      _
    // Predicated region
    $region6: #{encoder_cnn_forward.3} parent=1 // pred_check
      _
    $region7: #{encoder_cnn_forward.3} parent=1 // pred_check_branch
      %19 = sbr.rel (0) target = $region9
    $region8: #{encoder_cnn_forward.3} parent=1 // pred_region
      _
    $region9: #{encoder_cnn_forward.3} parent=1 // pred_fallthru
      _
    // Predicated region
    $region10: #{encoder_cnn_forward.3} parent=1 // pred_check
      _
    $region11: #{encoder_cnn_forward.3} parent=1 // pred_check_branch
      %21 = sbr.rel (0) target = $region13
    $region12: #{encoder_cnn_forward.3} parent=1 // pred_region
      _
    $region13: #{encoder_cnn_forward.3} parent=1 // pred_fallthru
      _
    // Predicated region
    $region14: #{encoder_cnn_forward.3} parent=1 // pred_check
      _
    $region15: #{encoder_cnn_forward.3} parent=1 // pred_check_branch
      %23 = sbr.rel (0) target = $region17
    $region16: #{encoder_cnn_forward.3} parent=1 // pred_region
      _
    $region17: #{encoder_cnn_forward.3} parent=1 // pred_fallthru
      _
    // Predicated region
    $region18: #{encoder_cnn_forward.3} parent=1 // pred_check
      _
    $region19: #{encoder_cnn_forward.3} parent=1 // pred_check_branch
      %25 = sbr.rel (0) target = $region21
    $region20: #{encoder_cnn_forward.3} parent=1 // pred_region
      _
    $region21: #{encoder_cnn_forward.3} parent=1 // pred_fallthru
      _
    // Predicated region
    $region22: #{encoder_cnn_forward.3} parent=1 // pred_check
      _
    $region23: #{encoder_cnn_forward.3} parent=1 // pred_check_branch
      %27 = sbr.rel (0) target = $region25
    $region24: #{encoder_cnn_forward.3} parent=1 // pred_region
      _
    $region25: #{encoder_cnn_forward.3} parent=1 // pred_fallthru
      _
    // Predicated region
    $region26: #{encoder_cnn_forward.3} parent=1 // pred_check
      _
    $region27: #{encoder_cnn_forward.3} parent=1 // pred_check_branch
      %29 = sbr.rel (0) target = $region29
    $region28: #{encoder_cnn_forward.3} parent=1 // pred_region
      _
    $region29: #{encoder_cnn_forward.3} parent=1 // pred_fallthru
      _
    %v30 = vld [vmem:[%s0] sm:$0x3]
    %v31 = vld [vmem:[%s1] sm:$0xff]
    %v32 = vld [vmem:[%s1 + $0x8] sm:$0xff]
    %v33 = vld [vmem:[%s1 + $0x10] sm:$0xff]
    %v34 = vld [vmem:[%s1 + $0x18] sm:$0xff]
    %v35 = vld [vmem:[%s1 + $0x20] sm:$0xff]
    %v36 = vld [vmem:[%s1 + $0x28] sm:$0xff]
    %v37 = vld [vmem:[%s1 + $0x30] sm:$0xff]
    %v38 = vld [vmem:[%s1 + $0x38] sm:$0xff]
    %v39 = vld [vmem:[%s2] sm:$0x1]
    %v41 = vlaneseq
    %v42 = vshrl.u32 %v41, 7
    %v43 = vsub.s32 0, %v42
    %v44 = vrot.slane %v39, %v43
    %vm46 = vcmask 523264
    %v48 = vsel %vm46, %v30, 0
    %50 = vmatprep.subr.mxu0 0.0
    %51 = vmatpush1.msra.mxu0 %v31
    %52 = vmatprep.subr.mxu0 0.0
    %53 = vmatpush1.msra.mxu0 %v32
    %54 = vmatprep.subr.mxu0 0.0
    %55 = vmatpush1.msra.mxu0 %v33
    %56 = vmatprep.subr.mxu0 0.0
    %57 = vmatpush1.msra.mxu0 %v34
    %58 = vmatprep.subr.mxu0 0.0
    %59 = vmatpush1.msra.mxu0 %v35
    %60 = vmatprep.subr.mxu0 0.0
    %61 = vmatpush1.msra.mxu0 %v36
    %62 = vmatprep.subr.mxu0 0.0
    %63 = vmatpush1.msra.mxu0 %v37
    %64 = vmatprep.subr.mxu0 0.0
    %65 = vmatpush1.msra.mxu0 %v38
    %66 = vmatprep.subr.mxu0 0.0
    %67 = vmatpush1.msra.mxu0 0.0
    %68 = vmatprep.subr.mxu0 0.0
    %69 = vmatpush1.msra.mxu0 0.0
    %70 = vmatprep.subr.mxu0 0.0
    %71 = vmatpush1.msra.mxu0 0.0
    %72 = vmatprep.subr.mxu0 0.0
    %73 = vmatpush1.msra.mxu0 0.0
    %74 = vmatprep.subr.mxu0 0.0
    %75 = vmatpush1.msra.mxu0 0.0
    %76 = vmatprep.subr.mxu0 0.0
    %77 = vmatpush1.msra.mxu0 0.0
    %78 = vmatprep.subr.mxu0 0.0
    %79 = vmatpush1.msra.mxu0 0.0
    %80 = vmatprep.subr.mxu0 0.0
    %81 = vmatpush1.msra.mxu0 0.0
    %82 = vmatprep.subr.mxu0 0.0
    %83 = vmatpush1.msra.mxu0 0.0
    %84 = vmatprep.subr.mxu0 0.0
    %85 = vmatpush1.msra.mxu0 0.0
    %86 = vmatprep.subr.mxu0 0.0
    %87 = vmatpush1.msra.mxu0 0.0
    %88 = vmatprep.subr.mxu0 0.0
    %89 = vmatpush1.msra.mxu0 0.0
    %90 = vmatprep.subr.mxu0 0.0
    %91 = vmatpush1.msra.mxu0 0.0
    %92 = vmatprep.subr.mxu0 0.0
    %93 = vmatpush1.msra.mxu0 0.0
    %94 = vmatprep.subr.mxu0 0.0
    %95 = vmatpush1.msra.mxu0 0.0
    %96 = vmatprep.subr.mxu0 0.0
    %97 = vmatpush1.msra.mxu0 0.0
    %98 = vmatprep.subr.mxu0 0.0
    %99 = vmatpush1.msra.mxu0 0.0
    %100 = vmatprep.subr.mxu0 0.0
    %101 = vmatpush1.msra.mxu0 0.0
    %102 = vmatprep.subr.mxu0 0.0
    %103 = vmatpush1.msra.mxu0 0.0
    %104 = vmatprep.subr.mxu0 0.0
    %105 = vmatpush1.msra.mxu0 0.0
    %106 = vmatprep.subr.mxu0 0.0
    %107 = vmatpush1.msra.mxu0 0.0
    %108 = vmatprep.subr.mxu0 0.0
    %109 = vmatpush1.msra.mxu0 0.0
    %110 = vmatprep.subr.mxu0 0.0
    %111 = vmatpush1.msra.mxu0 0.0
    %112 = vmatprep.subr.mxu0 0.0
    %113 = vmatpush1.msra.mxu0 0.0
    %114 = vmatprep.mubr.f32.mxu0 0.0
    %115 = vmatmul.mubr.f32.gmra.mrb[0].mxu0 %v48
    %v116 = vpop.f32.mrb[0].mxu0
    %v117 = vadd.f32 %v44, %v116
    %v118 = vpop.f32.mrb[0].mxu0
    %119 = vdwg.mxu0
    %v120 = vld [vmem:[%s3] sm:$0xff]
    %v121 = vld [vmem:[%s3 + $0x8] sm:$0xff]
    %v122 = vld [vmem:[%s3 + $0x10] sm:$0xff]
    %v123 = vld [vmem:[%s3 + $0x18] sm:$0xff]
    %v124 = vld [vmem:[%s3 + $0x20] sm:$0xff]
    %v125 = vld [vmem:[%s3 + $0x28] sm:$0xff]
    %v126 = vld [vmem:[%s3 + $0x30] sm:$0xff]
    %v127 = vld [vmem:[%s3 + $0x38] sm:$0xff]
    %v128 = vld [vmem:[%s4] sm:$0x1]
    %v130 = vlaneseq
    %v131 = vshrl.u32 %v130, 7
    %v132 = vsub.s32 0, %v131
    %v133 = vrot.slane %v128, %v132
    %v136 = vsel %vm46, %v117, 0
    %138 = vmatprep.subr.mxu0 0.0
    %139 = vmatpush1.msra.mxu0 %v120
    %140 = vmatprep.subr.mxu0 0.0
    %141 = vmatpush1.msra.mxu0 %v121
    %142 = vmatprep.subr.mxu0 0.0
    %143 = vmatpush1.msra.mxu0 %v122
    %144 = vmatprep.subr.mxu0 0.0
    %145 = vmatpush1.msra.mxu0 %v123
    %146 = vmatprep.subr.mxu0 0.0
    %147 = vmatpush1.msra.mxu0 %v124
    %148 = vmatprep.subr.mxu0 0.0
    %149 = vmatpush1.msra.mxu0 %v125
    %150 = vmatprep.subr.mxu0 0.0
    %151 = vmatpush1.msra.mxu0 %v126
    %152 = vmatprep.subr.mxu0 0.0
    %153 = vmatpush1.msra.mxu0 %v127
    %154 = vmatprep.subr.mxu0 0.0
    %155 = vmatpush1.msra.mxu0 0.0
    %156 = vmatprep.subr.mxu0 0.0
    %157 = vmatpush1.msra.mxu0 0.0
    %158 = vmatprep.subr.mxu0 0.0
    %159 = vmatpush1.msra.mxu0 0.0
    %160 = vmatprep.subr.mxu0 0.0
    %161 = vmatpush1.msra.mxu0 0.0
    %162 = vmatprep.subr.mxu0 0.0
    %163 = vmatpush1.msra.mxu0 0.0
    %164 = vmatprep.subr.mxu0 0.0
    %165 = vmatpush1.msra.mxu0 0.0
    %166 = vmatprep.subr.mxu0 0.0
    %167 = vmatpush1.msra.mxu0 0.0
    %168 = vmatprep.subr.mxu0 0.0
    %169 = vmatpush1.msra.mxu0 0.0
    %170 = vmatprep.subr.mxu0 0.0
    %171 = vmatpush1.msra.mxu0 0.0
    %172 = vmatprep.subr.mxu0 0.0
    %173 = vmatpush1.msra.mxu0 0.0
    %174 = vmatprep.subr.mxu0 0.0
    %175 = vmatpush1.msra.mxu0 0.0
    %176 = vmatprep.subr.mxu0 0.0
    %177 = vmatpush1.msra.mxu0 0.0
    %178 = vmatprep.subr.mxu0 0.0
    %179 = vmatpush1.msra.mxu0 0.0
    %180 = vmatprep.subr.mxu0 0.0
    %181 = vmatpush1.msra.mxu0 0.0
    %182 = vmatprep.subr.mxu0 0.0
    %183 = vmatpush1.msra.mxu0 0.0
    %184 = vmatprep.subr.mxu0 0.0
    %185 = vmatpush1.msra.mxu0 0.0
    %186 = vmatprep.subr.mxu0 0.0
    %187 = vmatpush1.msra.mxu0 0.0
    %188 = vmatprep.subr.mxu0 0.0
    %189 = vmatpush1.msra.mxu0 0.0
    %190 = vmatprep.subr.mxu0 0.0
    %191 = vmatpush1.msra.mxu0 0.0
    %192 = vmatprep.subr.mxu0 0.0
    %193 = vmatpush1.msra.mxu0 0.0
    %194 = vmatprep.subr.mxu0 0.0
    %195 = vmatpush1.msra.mxu0 0.0
    %196 = vmatprep.subr.mxu0 0.0
    %197 = vmatpush1.msra.mxu0 0.0
    %198 = vmatprep.subr.mxu0 0.0
    %199 = vmatpush1.msra.mxu0 0.0
    %200 = vmatprep.subr.mxu0 0.0
    %201 = vmatpush1.msra.mxu0 0.0
    %202 = vmatprep.mubr.f32.mxu0 0.0
    %203 = vmatmul.mubr.f32.gmra.mrb[0].mxu0 %v136
    %v204 = vpop.f32.mrb[0].mxu0
    %v205 = vadd.f32 %v133, %v204
    %v206 = vpop.f32.mrb[0].mxu0
    %207 = vdwg.mxu0
    %209 = vrot.lane.b32.xlu0 %v205, 96
    %v210 = vpop.permute.xlu0 %209
    %vm212 = vcmask 123904
    %213 = vst.msk [vmem:[#allocation2] sm:$0x3] %vm212, %v210
    %vm214 = vcmask 254976
    %v215 = vsel %vm214, %v205, 0.0
    %216 = vadd.xlane.f32.xlu0 %v215
    %v217 = vpop.xlane.xlu0 %216
    %v218 = vrcp.pop 32.0
    %v219 = vmul.f32 %v217, %v218
    %v220 = vsub.f32 %v205, %v219
    %v221 = vmul.f32 %v220, %v220
    %v222 = vsel %vm214, %v221, 0.0
    %223 = vadd.xlane.f32.xlu0 %v222
    %v224 = vpop.xlane.xlu0 %223
    %v225 = vmul.f32 %v224, %v218
    %v226 = vadd.f32 %v225, 1e-06
    %v227 = vrsqrt.pop %v226
    %v228 = vmul.f32 %v220, %v227
    %v229 = vld [vmem:[%s5] sm:$0x1]
    %v231 = vlaneseq
    %v232 = vshrl.u32 %v231, 7
    %v233 = vsub.s32 0, %v232
    %v234 = vrot.slane %v229, %v233
    %v236 = vmul.f32 %v228, %v234
    %v237 = vld [vmem:[%s6] sm:$0x1]
    %v239 = vlaneseq
    %v240 = vshrl.u32 %v239, 7
    %v241 = vsub.s32 0, %v240
    %v242 = vrot.slane %v237, %v241
    %v244 = vadd.f32 %v236, %v242
    %245 = vst.msk [vmem:[#allocation4] sm:$0x3] %vm214, %v244
    // Predicated region
    $region30: #{encoder_cnn_forward.3} parent=1 // pred_check
      _
    $region31: #{encoder_cnn_forward.3} parent=1 // pred_check_branch
      %247 = sbr.rel (0) target = $region33
    $region32: #{encoder_cnn_forward.3} parent=1 // pred_region
      %s249 = ssub.s32 32, 32
      %250 = vsyncadd [#allocation3], %s249
      %s252 = sshll.u32 [#allocation2], 4
      %s253 = int_to_ptr.vmem [resolvable:$true] %s252
      %255 = dma.vmem_to_hbm [thread:$0]  %s253, 32, %s7, [#allocation3]
    $region33: #{encoder_cnn_forward.3} parent=1 // pred_fallthru
      _
    // Predicated region
    $region34: #{encoder_cnn_forward.3} parent=1 // pred_check
      _
    $region35: #{encoder_cnn_forward.3} parent=1 // pred_check_branch
      %257 = sbr.rel (0) target = $region37
    $region36: #{encoder_cnn_forward.3} parent=1 // pred_region
      %s259 = ssub.s32 32, 32
      %260 = vsyncadd [#allocation5], %s259
      %s262 = sshll.u32 [#allocation4], 4
      %s263 = int_to_ptr.vmem [resolvable:$true] %s262
      %265 = dma.vmem_to_hbm [thread:$0]  %s263, 32, %s8, [#allocation5]
    $region37: #{encoder_cnn_forward.3} parent=1 // pred_fallthru
      _
    // Predicated region
    $region38: #{encoder_cnn_forward.3} parent=1 // pred_check
      _
    $region39: #{encoder_cnn_forward.3} parent=1 // pred_check_branch
      %267 = sbr.rel (0) target = $region41
    $region40: #{encoder_cnn_forward.3} parent=1 // pred_region
      %268 = dma.done [#allocation3], 32
    $region41: #{encoder_cnn_forward.3} parent=1 // pred_fallthru
      _
    // Predicated region
    $region42: #{encoder_cnn_forward.3} parent=1 // pred_check
      _
    $region43: #{encoder_cnn_forward.3} parent=1 // pred_check_branch
      %270 = sbr.rel (0) target = $region45
    $region44: #{encoder_cnn_forward.3} parent=1 // pred_region
      %271 = dma.done [#allocation5], 32
    $region45: #{encoder_cnn_forward.3} parent=1 // pred_fallthru
      _
    %272 = vsyncpa [#allocation3], 1
    %273 = vsyncpa [#allocation5], 1

</llo_original>
